<compile_context>
chip_gen: v7x
topology: tpu7x:2x2x1
jax: 0.10.0
libtpu: 0.0.40
codegen_flags: <defaults>
</compile_context>

<pallas_src>
import functools

import jax
import jax.numpy as jnp
from jax import lax
from jax.experimental import pallas as pl
from jax.experimental.pallas import tpu as pltpu

_INV_SQRT2 = 0.7071067811865476


def _gsoftmax_partial_kernel(x_ref, mu_ref, sigma_ref, tgt_ref, part_ref, *,
                             scale, n_total, tile_n):
    x = x_ref[...].astype(jnp.float32)                           # (TILE_N, C)
    mu = mu_ref[...].astype(jnp.float32)                         # (1, C)
    sigma = jnp.maximum(sigma_ref[...].astype(jnp.float32), 1e-6)

    # Hoist the divide off the (TILE_N, C) tile: one reciprocal per class.
    inv = _INV_SQRT2 / sigma                                     # (1, C)
    z = (x - mu) * inv

    # prob = 0.5*(1+erf(z))*scale + x  ==  half_scale*erf(z) + x + half_scale
    half_scale = 0.5 * float(scale)
    logits = half_scale * lax.erf(z) + x + half_scale            # (TILE_N, C)

    # Row-wise logsumexp (online-stable form).
    m = jnp.max(logits, axis=-1, keepdims=True)                  # (TILE_N, 1)
    lse = m + jnp.log(jnp.sum(jnp.exp(logits - m), axis=-1, keepdims=True))

    # Target-logit extraction via iota compare + masked row reduce (VPU/XLU).
    tgt = tgt_ref[...]                                           # (TILE_N, 1) int32
    col = lax.broadcasted_iota(jnp.int32, logits.shape, 1)
    tgt_logit = jnp.sum(jnp.where(col == tgt, logits, 0.0),
                        axis=-1, keepdims=True)                  # (TILE_N, 1)

    per_row = lse - tgt_logit                                    # (TILE_N, 1)

    # Mask rows of the (possibly padded) final tile.
    row = lax.broadcasted_iota(jnp.int32, per_row.shape, 0)
    global_row = row + pl.program_id(0) * tile_n
    per_row = jnp.where(global_row < n_total, per_row, 0.0)

    # Per-tile partial sum (divide by N once, outside the kernel).
    part_ref[...] = jnp.sum(per_row, axis=0, keepdims=True).reshape(1, 1, 1)


def _choose_tile_n(n, c, itemsize):
    """Tile rows: multiple of the sublane count, <= ~2 MiB per x buffer."""
    sub = {4: 8, 2: 16, 1: 32}.get(itemsize, 8)
    rows_budget = max(sub, (2 * 1024 * 1024) // max(1, c * itemsize))
    tile = min(1024, rows_budget)
    if tile >= n:
        return n                       # full-array block is always legal
    return max(sub, (tile // sub) * sub)


def gaussian_softmax_criterion(x, target, mu, sigma, scale=1.0, tile_n=None):
    """x: (N, C) float logits (native dtype); target: (N,) int; mu/sigma: (C,)."""
    n, c = x.shape
    if tile_n is None:
        tile_n = _choose_tile_n(n, c, jnp.dtype(x.dtype).itemsize)
    num_tiles = pl.cdiv(n, tile_n)

    mu2 = mu.reshape(1, c)
    sigma2 = sigma.reshape(1, c)
    tgt2 = target.reshape(n, 1).astype(jnp.int32)

    kernel = functools.partial(_gsoftmax_partial_kernel,
                               scale=float(scale), n_total=n, tile_n=tile_n)

    partials = pl.pallas_call(
        kernel,
        out_shape=jax.ShapeDtypeStruct((num_tiles, 1, 1), jnp.float32),
        grid=(num_tiles,),
        in_specs=[
            pl.BlockSpec((tile_n, c), lambda i: (i, 0)),   # x tile
            pl.BlockSpec((1, c), lambda i: (0, 0)),        # mu (grid-invariant)
            pl.BlockSpec((1, c), lambda i: (0, 0)),        # sigma (grid-invariant)
            pl.BlockSpec((tile_n, 1), lambda i: (i, 0)),   # targets tile
        ],
        out_specs=pl.BlockSpec((1, 1, 1), lambda i: (i, 0, 0)),
        compiler_params=pltpu.CompilerParams(
            dimension_semantics=("parallel",),             # independent tiles
            vmem_limit_bytes=32 * 1024 * 1024,
        ),
    )(x, mu2, sigma2, tgt2)

    return jnp.sum(partials) / n


def _reference(x, target, mu, sigma, scale=1.0):
    sigma_c = jnp.maximum(sigma, 1e-6)
    cdf = 0.5 * (1.0 + lax.erf((x.astype(jnp.float32) - mu[None, :])
                               / (sigma_c[None, :] * jnp.sqrt(2.0))))
    logits = cdf * scale + x.astype(jnp.float32)
    logz = jax.nn.logsumexp(logits, axis=-1)
    tgt_logit = jnp.take_along_axis(logits, target[:, None], axis=-1)[:, 0]
    return jnp.mean(logz - tgt_logit)


if __name__ == "__main__":
    # TODO(synk): predict()/get_compactness()/get_separability() are host-side
    # utilities of the module and are not part of the forward loss; not kernelized.
    num_classes = 16
    batch = 8
    mu_init, sigma_init, scale = -0.05, 1.0, 1.0

    mu = jnp.ones((num_classes,), jnp.float32) * mu_init
    sigma = jnp.ones((num_classes,), jnp.float32) * sigma_init

    key = jax.random.PRNGKey(0)
    kx, kt = jax.random.split(key)
    x = jax.random.normal(kx, (batch, num_classes), dtype=jnp.float32)
    target = jax.random.randint(kt, (batch,), 0, num_classes, dtype=jnp.int32)

    loss = gaussian_softmax_criterion(x, target, mu, sigma, scale)
    loss = jax.block_until_ready(loss)
    ref = _reference(x, target, mu, sigma, scale)
    assert jnp.allclose(loss, ref, atol=1e-5, rtol=1e-5), (loss, ref)

    # Multi-tile + padded-final-tile path (exercises masking and parallel grid).
    kx2, kt2 = jax.random.split(jax.random.PRNGKey(1))
    n2 = 20
    x2 = jax.random.normal(kx2, (n2, num_classes), dtype=jnp.float32)
    t2 = jax.random.randint(kt2, (n2,), 0, num_classes, dtype=jnp.int32)
    loss2 = jax.block_until_ready(
        gaussian_softmax_criterion(x2, t2, mu, sigma, scale, tile_n=8))
    ref2 = _reference(x2, t2, mu, sigma, scale)
    assert jnp.allclose(loss2, ref2, atol=1e-5, rtol=1e-5), (loss2, ref2)

    # bf16-input path (native-dtype tile, widened in-kernel).
    x3 = x.astype(jnp.bfloat16)
    loss3 = jax.block_until_ready(
        gaussian_softmax_criterion(x3, target, mu, sigma, scale))
    ref3 = _reference(x3, target, mu, sigma, scale)
    assert jnp.allclose(loss3, ref3, atol=1e-2, rtol=1e-2), (loss3, ref3)

    print("KERNEL_OK")
</pallas_src>

<mosaic_0001>
module attributes {stable_mosaic.version = 11 : i64} {
  func.func @_gsoftmax_partial_kernel(%arg0: i32, %arg1: memref<8x16xf32, #tpu.memory_space<vmem>>, %arg2: memref<1x16xf32, #tpu.memory_space<vmem>>, %arg3: memref<1x16xf32, #tpu.memory_space<vmem>>, %arg4: memref<8x1xi32, #tpu.memory_space<vmem>>, %arg5: memref<1x1x1xf32, #tpu.memory_space<vmem>>) attributes {dimension_semantics = [#tpu.dimension_semantics<parallel>], iteration_bounds = array<i64: 1>, scalar_prefetch = 0 : i64, scratch_operands = 0 : i64, tpu.core_type = #tpu.core_type<tc>, window_params = [{transform_indices = @transform_0, window_bounds = array<i64: 8, 16>}, {pipeline_mode = #tpu.pipeline_mode<synchronous>, transform_indices = @transform_1, window_bounds = array<i64: 1, 16>}, {pipeline_mode = #tpu.pipeline_mode<synchronous>, transform_indices = @transform_2, window_bounds = array<i64: 1, 16>}, {transform_indices = @transform_3, window_bounds = array<i64: 8, 1>}, {transform_indices = @transform_4, window_bounds = array<i64: 1, 1, 1>}]} {
    %c0 = arith.constant 0 : index
    %c0_0 = arith.constant 0 : index
    %0 = vector.load %arg1[%c0, %c0_0] : memref<8x16xf32, #tpu.memory_space<vmem>>, vector<8x16xf32>
    %c0_1 = arith.constant 0 : index
    %c0_2 = arith.constant 0 : index
    %1 = vector.load %arg2[%c0_1, %c0_2] : memref<1x16xf32, #tpu.memory_space<vmem>>, vector<1x16xf32>
    %c0_3 = arith.constant 0 : index
    %c0_4 = arith.constant 0 : index
    %2 = vector.load %arg3[%c0_3, %c0_4] : memref<1x16xf32, #tpu.memory_space<vmem>>, vector<1x16xf32>
    %cst = arith.constant 9.99999997E-7 : f32
    %3 = vector.broadcast %cst : f32 to vector<1x16xf32>
    %4 = arith.maximumf %2, %3 : vector<1x16xf32>
    %cst_5 = arith.constant 0.707106769 : f32
    %5 = vector.broadcast %cst_5 : f32 to vector<1x16xf32>
    %6 = arith.divf %5, %4 : vector<1x16xf32>
    %7 = vector.broadcast %1 : vector<1x16xf32> to vector<8x16xf32>
    %8 = arith.subf %0, %7 : vector<8x16xf32>
    %9 = vector.broadcast %6 : vector<1x16xf32> to vector<8x16xf32>
    %10 = arith.mulf %8, %9 : vector<8x16xf32>
    %11 = math.erf %10 : vector<8x16xf32>
    %cst_6 = arith.constant 5.000000e-01 : f32
    %12 = vector.broadcast %cst_6 : f32 to vector<8x16xf32>
    %13 = arith.mulf %12, %11 : vector<8x16xf32>
    %14 = arith.addf %13, %0 : vector<8x16xf32>
    %cst_7 = arith.constant 5.000000e-01 : f32
    %15 = vector.broadcast %cst_7 : f32 to vector<8x16xf32>
    %16 = arith.addf %14, %15 : vector<8x16xf32>
    %cst_8 = arith.constant dense<0xFF800000> : vector<8xf32>
    %17 = vector.multi_reduction <maximumf>, %16, %cst_8 [1] : vector<8x16xf32> to vector<8xf32>
    %18 = vector.shape_cast %17 : vector<8xf32> to vector<8x1xf32>
    %19 = vector.broadcast %18 : vector<8x1xf32> to vector<8x16xf32>
    %20 = arith.subf %16, %19 : vector<8x16xf32>
    %21 = math.exp %20 : vector<8x16xf32>
    %cst_9 = arith.constant dense<0.000000e+00> : vector<8xf32>
    %22 = vector.multi_reduction <add>, %21, %cst_9 [1] : vector<8x16xf32> to vector<8xf32>
    %23 = vector.shape_cast %22 : vector<8xf32> to vector<8x1xf32>
    %24 = math.log %23 : vector<8x1xf32>
    %25 = arith.addf %18, %24 : vector<8x1xf32>
    %c0_10 = arith.constant 0 : index
    %c0_11 = arith.constant 0 : index
    %26 = vector.load %arg4[%c0_10, %c0_11] : memref<8x1xi32, #tpu.memory_space<vmem>>, vector<8x1xi32>
    %27 = tpu.iota {dimensions = array<i32: 1>} : vector<8x16xi32>
    %28 = vector.broadcast %26 : vector<8x1xi32> to vector<8x16xi32>
    %29 = arith.cmpi eq, %27, %28 : vector<8x16xi32>
    %cst_12 = arith.constant 0.000000e+00 : f32
    %30 = vector.broadcast %cst_12 : f32 to vector<8x16xf32>
    %31 = arith.select %29, %16, %30 : vector<8x16xi1>, vector<8x16xf32>
    %cst_13 = arith.constant dense<0.000000e+00> : vector<8xf32>
    %32 = vector.multi_reduction <add>, %31, %cst_13 [1] : vector<8x16xf32> to vector<8xf32>
    %33 = vector.shape_cast %32 : vector<8xf32> to vector<8x1xf32>
    %34 = arith.subf %25, %33 : vector<8x1xf32>
    %35 = tpu.iota {dimensions = array<i32: 0>} : vector<8x1xi32>
    %c8_i32 = arith.constant 8 : i32
    %36 = arith.muli %arg0, %c8_i32 : i32
    %37 = vector.broadcast %36 : i32 to vector<8x1xi32>
    %38 = arith.addi %35, %37 : vector<8x1xi32>
    %c8_i32_14 = arith.constant 8 : i32
    %39 = vector.broadcast %c8_i32_14 : i32 to vector<8x1xi32>
    %40 = arith.cmpi slt, %38, %39 : vector<8x1xi32>
    %cst_15 = arith.constant 0.000000e+00 : f32
    %41 = vector.broadcast %cst_15 : f32 to vector<8x1xf32>
    %42 = arith.select %40, %34, %41 : vector<8x1xi1>, vector<8x1xf32>
    %cst_16 = arith.constant dense<0.000000e+00> : vector<1xf32>
    %43 = vector.multi_reduction <add>, %42, %cst_16 [0] : vector<8x1xf32> to vector<1xf32>
    %44 = vector.shape_cast %43 : vector<1xf32> to vector<1x1xf32>
    %45 = vector.shape_cast %44 : vector<1x1xf32> to vector<1x1x1xf32>
    %c0_17 = arith.constant 0 : index
    %c0_18 = arith.constant 0 : index
    %c0_19 = arith.constant 0 : index
    %46 = vector.load %arg5[%c0_17, %c0_18, %c0_19] : memref<1x1x1xf32, #tpu.memory_space<vmem>>, vector<1x1x1xf32>
    tpu.vector_store %arg5[%c0_17, %c0_18, %c0_19], %45 {strides = array<i32>} : memref<1x1x1xf32, #tpu.memory_space<vmem>>, vector<1x1x1xf32>,
    return
  }
  func.func @transform_0(%arg0: i32) -> (i32, i32) {
    %c0_i32 = arith.constant 0 : i32
    %c0_i32_0 = arith.constant 0 : i32
    return %arg0, %c0_i32 : i32, i32
  }
  func.func @transform_1(%arg0: i32) -> (i32, i32) {
    %c0_i32 = arith.constant 0 : i32
    %c0_i32_0 = arith.constant 0 : i32
    %c0_i32_1 = arith.constant 0 : i32
    return %c0_i32, %c0_i32_0 : i32, i32
  }
  func.func @transform_2(%arg0: i32) -> (i32, i32) {
    %c0_i32 = arith.constant 0 : i32
    %c0_i32_0 = arith.constant 0 : i32
    %c0_i32_1 = arith.constant 0 : i32
    return %c0_i32, %c0_i32_0 : i32, i32
  }
  func.func @transform_3(%arg0: i32) -> (i32, i32) {
    %c0_i32 = arith.constant 0 : i32
    %c0_i32_0 = arith.constant 0 : i32
    return %arg0, %c0_i32 : i32, i32
  }
  func.func @transform_4(%arg0: i32) -> (i32, i32, i32) {
    %c0_i32 = arith.constant 0 : i32
    %c0_i32_0 = arith.constant 0 : i32
    %c0_i32_1 = arith.constant 0 : i32
    return %arg0, %c0_i32, %c0_i32_0 : i32, i32, i32
  }
}

</mosaic_0001>

<llo_original>
// kernel: tpu_custom_call.1
$region0: #{tpu_custom_call.1}
  #allocation0 [shape = 'u32[]', space=smem, size = 0x4, offset = 0x4, fixed_abs, tag = 'smem constant byte address 0x4 - core index']
  #allocation1 [shape = 'u32[144,128]{1,0:T(1,128)}', space=vmem, size = 0x12000, scoped, tag = 'internal scratch']
  %s0 = inlined_call_operand.vmem [shape: f32[8,16], index: 0, kind: input, shape index: {}]
  %s1 = inlined_call_operand.vmem [shape: f32[1,16], index: 1, kind: input, shape index: {}]
  %s2 = inlined_call_operand.vmem [shape: f32[1,16], index: 2, kind: input, shape index: {}]
  %s3 = inlined_call_operand.vmem [shape: s32[8,1], index: 3, kind: input, shape index: {}]
  %s4 = inlined_call_operand.hbm [shape: f32[1,1,1], index: 4, kind: output, shape index: {}]
  %s5 = sld [smem:[#allocation0]]
  $region26: #{tpu_custom_call.1} parent=0
    _
  %s7 = ssub.s32 1, %s5
  %s8 = scalar_select 0, %s7, %s5
  $region1: #{tpu_custom_call.1} parent=0
    #allocation2 [shape = 'u8[512]{0}', space=vmem, size = 0x400, scoped, tag = 'output window, operand 0, single buffered']
    #allocation3 [shape = 's32[1]{0}', space=sflag, size = 0x4, scoped, tag = 'scoped memory for tpu_custom_call.1']
    %9 = vsyncpa [#allocation3], 0
    // Predicated region
    $region2: #{tpu_custom_call.1} parent=1 // pred_check
      _
    $region3: #{tpu_custom_call.1} parent=1 // pred_check_branch
      %11 = sbr.rel (0) target = $region5
    $region4: #{tpu_custom_call.1} parent=1 // pred_region
      _
    $region5: #{tpu_custom_call.1} parent=1 // pred_fallthru
      _
    // Predicated region
    $region6: #{tpu_custom_call.1} parent=1 // pred_check
      _
    $region7: #{tpu_custom_call.1} parent=1 // pred_check_branch
      %13 = sbr.rel (0) target = $region9
    $region8: #{tpu_custom_call.1} parent=1 // pred_region
      _
    $region9: #{tpu_custom_call.1} parent=1 // pred_fallthru
      _
    // Predicated region
    $region10: #{tpu_custom_call.1} parent=1 // pred_check
      _
    $region11: #{tpu_custom_call.1} parent=1 // pred_check_branch
      %15 = sbr.rel (0) target = $region13
    $region12: #{tpu_custom_call.1} parent=1 // pred_region
      _
    $region13: #{tpu_custom_call.1} parent=1 // pred_fallthru
      _
    // Predicated region
    $region14: #{tpu_custom_call.1} parent=1 // pred_check
      _
    $region15: #{tpu_custom_call.1} parent=1 // pred_check_branch
      %17 = sbr.rel (0) target = $region17
    $region16: #{tpu_custom_call.1} parent=1 // pred_region
      _
    $region17: #{tpu_custom_call.1} parent=1 // pred_fallthru
      _
    %v18 = vld [vmem:[%s0] sm:$0xff]
    %v19 = vld [vmem:[%s1] sm:$0x1]
    %v20 = vld [vmem:[%s2] sm:$0x1]
    %v21 = vmax.f32 %v20, 1e-06
    %v22 = vrcp.pop %v21
    %v23 = vmul.f32 0.70710677, %v22
    %v25 = vlaneseq
    %v26 = vshrl.u32 %v25, 7
    %v27 = vsub.s32 0, %v26
    %v28 = vrot.slane %v19, %v27
    %v30 = vsub.f32 %v18, %v28
    %v32 = vlaneseq
    %v33 = vshrl.u32 %v32, 7
    %v34 = vsub.s32 0, %v33
    %v35 = vrot.slane %v23, %v34
    %v37 = vmul.f32 %v30, %v35
    %v38 = verf.f32.pop %v37
    %v39 = vmul.f32 %v38, 0.5
    %v40 = vadd.f32 %v39, %v18
    %v41 = vadd.f32 %v40, 0.5
    %vm42 = vcmask 130048
    %v43 = vsel %vm42, %v41, -inf
    %44 = vmax.xlane.f32.xlu0 %v43
    %v45 = vpop.xlane.xlu0 %44
    %v46 = vsub.f32 %v41, %v45
    %v47 = vmul.f32 %v46, 1.442695
    %v48 = vpow.pop %v47
    %v49 = vsel %vm42, %v48, 0.0
    %50 = vadd.xlane.f32.xlu0 %v49
    %v51 = vpop.xlane.xlu0 %50
    %v52 = vlog2.pop %v51
    %v53 = vmul.f32 %v52, 0.6931472
    %v54 = vadd.f32 %v45, %v53
    %v55 = vld [vmem:[%s3] sm:$0xff]
    %v56 = vlaneseq
    %v57 = vand.u32 %v56, 127
    %58 = vset.pattern.permute.xlu0 0
    %59 = vperm.xlu0 %58, %v55
    %v60 = vpop.permute.xlu0 %59
    %vm61 = vcmp.eq.s32.totalorder %v57, %v60
    %v62 = vsel %vm61, %v41, 0.0
    %v63 = vsel %vm42, %v62, 0.0
    %64 = vadd.xlane.f32.xlu0 %v63
    %v65 = vpop.xlane.xlu0 %64
    %v66 = vsub.f32 %v54, %v65
    %v67 = vlaneseq
    %v68 = vshrl.u32 %v67, 7
    %s69 = smul.u32 0, 8
    %v70 = vstv %s69
    %v71 = vadd.s32 %v68, %v70
    %vm72 = vcmp.lt.s32.totalorder %v71, 8
    %v73 = vsel %vm72, %v66, 0.0
    %v74 = vrot.slane %v73, 4
    %v75 = vadd.f32 %v73, %v74
    %v76 = vrot.slane %v75, 2
    %v77 = vadd.f32 %v75, %v76
    %v78 = vrot.slane %v77, 1
    %v79 = vadd.f32 %v77, %v78
    %vm80 = vcmask 0
    %81 = vst.msk [vmem:[#allocation2] sm:$0x1] %vm80, %v79
    // Predicated region
    $region18: #{tpu_custom_call.1} parent=1 // pred_check
      _
    $region19: #{tpu_custom_call.1} parent=1 // pred_check_branch
      %83 = sbr.rel (0) target = $region21
    $region20: #{tpu_custom_call.1} parent=1 // pred_region
      %s85 = ssub.s32 16, 16
      %86 = vsyncadd [#allocation3], %s85
      %s88 = sshll.u32 [#allocation2], 4
      %s89 = int_to_ptr.vmem [resolvable:$true] %s88
      %91 = dma.vmem_to_hbm [thread:$0]  %s89, 16, %s4, [#allocation3]
    $region21: #{tpu_custom_call.1} parent=1 // pred_fallthru
      _
    // Predicated region
    $region22: #{tpu_custom_call.1} parent=1 // pred_check
      _
    $region23: #{tpu_custom_call.1} parent=1 // pred_check_branch
      %93 = sbr.rel (0) target = $region25
    $region24: #{tpu_custom_call.1} parent=1 // pred_region
      %94 = dma.done [#allocation3], 16
    $region25: #{tpu_custom_call.1} parent=1 // pred_fallthru
      _
    %95 = vsyncpa [#allocation3], 1

</llo_original>
